<compile_context>
chip_gen: v7x
topology: tpu7x:2x2x1
jax: 0.10.0
libtpu: 0.0.40
codegen_flags: <defaults>
</compile_context>

<pallas_src>
import functools

import jax
import jax.numpy as jnp
from jax.experimental import pallas as pl
from jax.experimental.pallas import tpu as pltpu


def _rotary_kernel(q_ref, k_ref, cos_ref, sin_ref, oq_ref, ok_ref, *, half):
    # q_ref/k_ref/oq_ref/ok_ref: (tile_bh, tile_s, D)
    # cos_ref/sin_ref:           (1, tile_s, half)  float32
    c = cos_ref[...]
    s = sin_ref[...]

    def apply(x_ref, o_ref):
        x = x_ref[...].astype(jnp.float32)
        x1 = x[:, :, :half]
        x2 = x[:, :, half:]
        # rotate_half folded in: out = [x1*c - x2*s, x2*c + x1*s]
        o_ref[:, :, :half] = (x1 * c - x2 * s).astype(o_ref.dtype)
        o_ref[:, :, half:] = (x2 * c + x1 * s).astype(o_ref.dtype)

    apply(q_ref, oq_ref)
    apply(k_ref, ok_ref)


def _largest_divisor_leq(n, cap):
    """Largest divisor of n that is <= cap (>= 1)."""
    cap = max(1, min(int(cap), int(n)))
    for d in range(cap, 0, -1):
        if n % d == 0:
            return d
    return 1


@functools.partial(jax.jit, static_argnames=("base",))
def rotary_forward(q, k, *, base=10000):
    """Forward of Rotary: returns (q_rot, k_rot)."""
    assert q.shape == k.shape, "q and k must have the same shape"
    B, H, S, D = q.shape
    assert D % 2 == 0, "rotary dim must be even"
    half = D // 2

    # --- half-width cos/sin tables, kept in float32 --------------------------
    # emb = cat(freqs, freqs) in the PyTorch module, so cos/sin first and
    # second halves are identical; only the half-width tables are needed.
    # TODO(synk): the PyTorch-side mutable seq_len cache has no Pallas
    # equivalent; tables are rebuilt per trace (jit caches the trace anyway).
    inv_freq = 1.0 / (base ** (jnp.arange(0, D, 2, dtype=jnp.float32) / D))
    t = jnp.arange(S, dtype=jnp.float32)
    freqs = t[:, None] * inv_freq[None, :]          # [S, D/2]
    cos_h = jnp.cos(freqs)[None]                    # [1, S, D/2] float32
    sin_h = jnp.sin(freqs)[None]                    # [1, S, D/2] float32

    # --- flatten (B, H) into one row axis (free reshape) ---------------------
    BH = B * H
    qf = q.reshape(BH, S, D)
    kf = k.reshape(BH, S, D)

    # --- tiling: ~1 MiB blocks, exact divisors (no padding, no slicing) ------
    itemsize = jnp.dtype(q.dtype).itemsize
    target = 1 * 1024 * 1024                        # per-tensor block bytes

    # tile_s: divisor of S that is a multiple of 8 (or full S), fitting target.
    if S % 8 == 0 and S * D * itemsize > target:
        cap8 = max(1, (target // (D * itemsize)) // 8)
        tile_s = 8 * _largest_divisor_leq(S // 8, cap8)
    else:
        tile_s = S

    # tile_bh: divisor of BH so the whole block fits the target.
    cap_bh = max(1, target // (tile_s * D * itemsize))
    tile_bh = _largest_divisor_leq(BH, cap_bh)

    # Prefer >= 8 grid steps (pipeline depth / megacore balance) without
    # shrinking blocks below ~512 KiB.
    n_bh, n_s = BH // tile_bh, S // tile_s
    total_bytes = BH * S * D * itemsize
    min_steps = min(8, max(1, total_bytes // (512 * 1024)))
    while n_bh * n_s < min_steps and tile_bh > 1:
        tile_bh = _largest_divisor_leq(BH, tile_bh - 1)
        n_bh = BH // tile_bh

    kernel = functools.partial(_rotary_kernel, half=half)

    oq, ok = pl.pallas_call(
        kernel,
        out_shape=(
            jax.ShapeDtypeStruct((BH, S, D), q.dtype),
            jax.ShapeDtypeStruct((BH, S, D), k.dtype),
        ),
        grid=(n_bh, n_s),
        in_specs=[
            pl.BlockSpec((tile_bh, tile_s, D), lambda i, s: (i, s, 0)),
            pl.BlockSpec((tile_bh, tile_s, D), lambda i, s: (i, s, 0)),
            pl.BlockSpec((1, tile_s, half), lambda i, s: (0, s, 0)),
            pl.BlockSpec((1, tile_s, half), lambda i, s: (0, s, 0)),
        ],
        out_specs=(
            pl.BlockSpec((tile_bh, tile_s, D), lambda i, s: (i, s, 0)),
            pl.BlockSpec((tile_bh, tile_s, D), lambda i, s: (i, s, 0)),
        ),
        compiler_params=pltpu.CompilerParams(
            dimension_semantics=("parallel", "parallel"),
            vmem_limit_bytes=32 * 1024 * 1024,
        ),
    )(qf, kf, cos_h, sin_h)

    return oq.reshape(B, H, S, D), ok.reshape(B, H, S, D)


def _reference(q, k, base=10000):
    """Pure-JAX port of the PyTorch Rotary.forward."""
    _, _, S, D = q.shape
    inv_freq = 1.0 / (base ** (jnp.arange(0, D, 2, dtype=jnp.float32) / D))
    t = jnp.arange(S, dtype=jnp.float32)
    freqs = jnp.einsum("i,j->ij", t, inv_freq)
    emb = jnp.concatenate([freqs, freqs], axis=-1)
    cos = jnp.cos(emb)[None, None]
    sin = jnp.sin(emb)[None, None]

    def rotate_half(x):
        x1, x2 = jnp.split(x, 2, axis=-1)
        return jnp.concatenate([-x2, x1], axis=-1)

    return q * cos + rotate_half(q) * sin, k * cos + rotate_half(k) * sin


if __name__ == "__main__":
    # Shapes consistent with the module: q, k are [batch, heads, seq, head_dim].
    batch, heads, seq, dim = 2, 4, 8, 32

    key = jax.random.PRNGKey(0)
    kq, kk = jax.random.split(key)
    q = jax.random.normal(kq, (batch, heads, seq, dim), dtype=jnp.float32)
    k = jax.random.normal(kk, (batch, heads, seq, dim), dtype=jnp.float32)

    q_out, k_out = rotary_forward(q, k)
    q_out = jax.block_until_ready(q_out)
    k_out = jax.block_until_ready(k_out)

    q_ref, k_ref = _reference(q, k)
    assert jnp.allclose(q_out, q_ref, atol=1e-5, rtol=1e-5), "q mismatch vs reference"
    assert jnp.allclose(k_out, k_ref, atol=1e-5, rtol=1e-5), "k mismatch vs reference"

    print("KERNEL_OK")
</pallas_src>

<mosaic_0001>
module attributes {stable_mosaic.version = 11 : i64} {
  func.func @_rotary_kernel(%arg0: i32, %arg1: i32, %arg2: memref<8x8x32xf32, #tpu.memory_space<vmem>>, %arg3: memref<8x8x32xf32, #tpu.memory_space<vmem>>, %arg4: memref<1x8x16xf32, #tpu.memory_space<vmem>>, %arg5: memref<1x8x16xf32, #tpu.memory_space<vmem>>, %arg6: memref<8x8x32xf32, #tpu.memory_space<vmem>>, %arg7: memref<8x8x32xf32, #tpu.memory_space<vmem>>) attributes {dimension_semantics = [#tpu.dimension_semantics<parallel>, #tpu.dimension_semantics<parallel>], iteration_bounds = array<i64: 1, 1>, scalar_prefetch = 0 : i64, scratch_operands = 0 : i64, tpu.core_type = #tpu.core_type<tc>, window_params = [{transform_indices = @transform_0, window_bounds = array<i64: 8, 8, 32>}, {transform_indices = @transform_1, window_bounds = array<i64: 8, 8, 32>}, {transform_indices = @transform_2, window_bounds = array<i64: 1, 8, 16>}, {transform_indices = @transform_3, window_bounds = array<i64: 1, 8, 16>}, {transform_indices = @transform_4, window_bounds = array<i64: 8, 8, 32>}, {transform_indices = @transform_5, window_bounds = array<i64: 8, 8, 32>}]} {
    %c0 = arith.constant 0 : index
    %c0_0 = arith.constant 0 : index
    %c0_1 = arith.constant 0 : index
    %0 = vector.load %arg4[%c0, %c0_0, %c0_1] : memref<1x8x16xf32, #tpu.memory_space<vmem>>, vector<1x8x16xf32>
    %c0_2 = arith.constant 0 : index
    %c0_3 = arith.constant 0 : index
    %c0_4 = arith.constant 0 : index
    %1 = vector.load %arg5[%c0_2, %c0_3, %c0_4] : memref<1x8x16xf32, #tpu.memory_space<vmem>>, vector<1x8x16xf32>
    %c0_5 = arith.constant 0 : index
    %c0_6 = arith.constant 0 : index
    %c0_7 = arith.constant 0 : index
    %2 = vector.load %arg2[%c0_5, %c0_6, %c0_7] : memref<8x8x32xf32, #tpu.memory_space<vmem>>, vector<8x8x32xf32>
    %3 = vector.extract_strided_slice %2 {offsets = [0, 0, 0], sizes = [8, 8, 16], strides = [1, 1, 1]} : vector<8x8x32xf32> to vector<8x8x16xf32>
    %4 = vector.extract_strided_slice %2 {offsets = [0, 0, 16], sizes = [8, 8, 16], strides = [1, 1, 1]} : vector<8x8x32xf32> to vector<8x8x16xf32>
    %5 = vector.broadcast %0 : vector<1x8x16xf32> to vector<8x8x16xf32>
    %6 = arith.mulf %3, %5 : vector<8x8x16xf32>
    %7 = vector.broadcast %1 : vector<1x8x16xf32> to vector<8x8x16xf32>
    %8 = arith.mulf %4, %7 : vector<8x8x16xf32>
    %9 = arith.subf %6, %8 : vector<8x8x16xf32>
    %c0_8 = arith.constant 0 : index
    %c0_9 = arith.constant 0 : index
    %c0_10 = arith.constant 0 : index
    %10 = vector.load %arg6[%c0_8, %c0_9, %c0_10] : memref<8x8x32xf32, #tpu.memory_space<vmem>>, vector<8x8x16xf32>
    tpu.vector_store %arg6[%c0_8, %c0_9, %c0_10], %9 {strides = array<i32>} : memref<8x8x32xf32, #tpu.memory_space<vmem>>, vector<8x8x16xf32>,
    %11 = vector.broadcast %0 : vector<1x8x16xf32> to vector<8x8x16xf32>
    %12 = arith.mulf %4, %11 : vector<8x8x16xf32>
    %13 = vector.broadcast %1 : vector<1x8x16xf32> to vector<8x8x16xf32>
    %14 = arith.mulf %3, %13 : vector<8x8x16xf32>
    %15 = arith.addf %12, %14 : vector<8x8x16xf32>
    %c0_11 = arith.constant 0 : index
    %c0_12 = arith.constant 0 : index
    %c16 = arith.constant 16 : index
    %16 = vector.load %arg6[%c0_11, %c0_12, %c16] : memref<8x8x32xf32, #tpu.memory_space<vmem>>, vector<8x8x16xf32>
    tpu.vector_store %arg6[%c0_11, %c0_12, %c16], %15 {strides = array<i32>} : memref<8x8x32xf32, #tpu.memory_space<vmem>>, vector<8x8x16xf32>,
    %c0_13 = arith.constant 0 : index
    %c0_14 = arith.constant 0 : index
    %c0_15 = arith.constant 0 : index
    %17 = vector.load %arg3[%c0_13, %c0_14, %c0_15] : memref<8x8x32xf32, #tpu.memory_space<vmem>>, vector<8x8x32xf32>
    %18 = vector.extract_strided_slice %17 {offsets = [0, 0, 0], sizes = [8, 8, 16], strides = [1, 1, 1]} : vector<8x8x32xf32> to vector<8x8x16xf32>
    %19 = vector.extract_strided_slice %17 {offsets = [0, 0, 16], sizes = [8, 8, 16], strides = [1, 1, 1]} : vector<8x8x32xf32> to vector<8x8x16xf32>
    %20 = vector.broadcast %0 : vector<1x8x16xf32> to vector<8x8x16xf32>
    %21 = arith.mulf %18, %20 : vector<8x8x16xf32>
    %22 = vector.broadcast %1 : vector<1x8x16xf32> to vector<8x8x16xf32>
    %23 = arith.mulf %19, %22 : vector<8x8x16xf32>
    %24 = arith.subf %21, %23 : vector<8x8x16xf32>
    %c0_16 = arith.constant 0 : index
    %c0_17 = arith.constant 0 : index
    %c0_18 = arith.constant 0 : index
    %25 = vector.load %arg7[%c0_16, %c0_17, %c0_18] : memref<8x8x32xf32, #tpu.memory_space<vmem>>, vector<8x8x16xf32>
    tpu.vector_store %arg7[%c0_16, %c0_17, %c0_18], %24 {strides = array<i32>} : memref<8x8x32xf32, #tpu.memory_space<vmem>>, vector<8x8x16xf32>,
    %26 = vector.broadcast %0 : vector<1x8x16xf32> to vector<8x8x16xf32>
    %27 = arith.mulf %19, %26 : vector<8x8x16xf32>
    %28 = vector.broadcast %1 : vector<1x8x16xf32> to vector<8x8x16xf32>
    %29 = arith.mulf %18, %28 : vector<8x8x16xf32>
    %30 = arith.addf %27, %29 : vector<8x8x16xf32>
    %c0_19 = arith.constant 0 : index
    %c0_20 = arith.constant 0 : index
    %c16_21 = arith.constant 16 : index
    %31 = vector.load %arg7[%c0_19, %c0_20, %c16_21] : memref<8x8x32xf32, #tpu.memory_space<vmem>>, vector<8x8x16xf32>
    tpu.vector_store %arg7[%c0_19, %c0_20, %c16_21], %30 {strides = array<i32>} : memref<8x8x32xf32, #tpu.memory_space<vmem>>, vector<8x8x16xf32>,
    return
  }
  func.func @transform_0(%arg0: i32, %arg1: i32) -> (i32, i32, i32) {
    %c0_i32 = arith.constant 0 : i32
    %c0_i32_0 = arith.constant 0 : i32
    return %arg0, %arg1, %c0_i32 : i32, i32, i32
  }
  func.func @transform_1(%arg0: i32, %arg1: i32) -> (i32, i32, i32) {
    %c0_i32 = arith.constant 0 : i32
    %c0_i32_0 = arith.constant 0 : i32
    return %arg0, %arg1, %c0_i32 : i32, i32, i32
  }
  func.func @transform_2(%arg0: i32, %arg1: i32) -> (i32, i32, i32) {
    %c0_i32 = arith.constant 0 : i32
    %c0_i32_0 = arith.constant 0 : i32
    %c0_i32_1 = arith.constant 0 : i32
    return %c0_i32, %arg1, %c0_i32_0 : i32, i32, i32
  }
  func.func @transform_3(%arg0: i32, %arg1: i32) -> (i32, i32, i32) {
    %c0_i32 = arith.constant 0 : i32
    %c0_i32_0 = arith.constant 0 : i32
    %c0_i32_1 = arith.constant 0 : i32
    return %c0_i32, %arg1, %c0_i32_0 : i32, i32, i32
  }
  func.func @transform_4(%arg0: i32, %arg1: i32) -> (i32, i32, i32) {
    %c0_i32 = arith.constant 0 : i32
    %c0_i32_0 = arith.constant 0 : i32
    return %arg0, %arg1, %c0_i32 : i32, i32, i32
  }
  func.func @transform_5(%arg0: i32, %arg1: i32) -> (i32, i32, i32) {
    %c0_i32 = arith.constant 0 : i32
    %c0_i32_0 = arith.constant 0 : i32
    return %arg0, %arg1, %c0_i32 : i32, i32, i32
  }
}

</mosaic_0001>

<llo_original>
// kernel: rotary_forward.1
$region0: #{rotary_forward.1}
  #allocation0 [shape = 'u32[]', space=smem, size = 0x4, offset = 0x4, fixed_abs, tag = 'smem constant byte address 0x4 - core index']
  #allocation1 [shape = 'u32[144,128]{1,0:T(1,128)}', space=vmem, size = 0x12000, scoped, tag = 'internal scratch']
  %s0 = inlined_call_operand.hbm [shape: f32[8,8,32], index: 0, kind: input, shape index: {}]
  %s1 = inlined_call_operand.hbm [shape: f32[8,8,32], index: 1, kind: input, shape index: {}]
  %s2 = inlined_call_operand.vmem [shape: f32[1,8,16], index: 2, kind: input, shape index: {}]
  %s3 = inlined_call_operand.vmem [shape: f32[1,8,16], index: 3, kind: input, shape index: {}]
  %s4 = inlined_call_operand.hbm [shape: f32[8,8,32], index: 4, kind: output, shape index: {0}]
  %s5 = inlined_call_operand.hbm [shape: f32[8,8,32], index: 5, kind: output, shape index: {1}]
  %6 = xla_tuple %s4, %s5
  %s7 = sld [smem:[#allocation0]]
  $region42: #{rotary_forward.1} parent=0
    _
  %s9 = ssub.s32 1, %s7
  %s10 = scalar_select 0, %s9, %s7
  $region1: #{rotary_forward.1} parent=0
    #allocation2 [shape = 'u8[32768]{0}', space=vmem, size = 0x8000, scoped, tag = 'input window, operand 0, single buffered']
    #allocation3 [shape = 's32[1]{0}', space=sflag, size = 0x4, scoped, tag = 'scoped memory for rotary_forward.1']
    #allocation4 [shape = 's32[1]{0}', space=sflag, size = 0x4, scoped, tag = 'scoped memory for rotary_forward.1']
    #allocation5 [shape = 'u8[32768]{0}', space=vmem, size = 0x8000, scoped, tag = 'input window, operand 1, single buffered']
    #allocation6 [shape = 's32[1]{0}', space=sflag, size = 0x4, scoped, tag = 'scoped memory for rotary_forward.1']
    #allocation7 [shape = 'u8[32768]{0}', space=vmem, size = 0x8000, scoped, tag = 'output window, operand 0, single buffered']
    #allocation8 [shape = 'u8[32768]{0}', space=vmem, size = 0x8000, scoped, tag = 'output window, operand 1, single buffered']
    #allocation9 [shape = 's32[1]{0}', space=sflag, size = 0x4, scoped, tag = 'scoped memory for rotary_forward.1']
    %11 = vsyncpa [#allocation3], 0
    %12 = vsyncpa [#allocation6], 0
    %13 = vsyncpa [#allocation4], 0
    %14 = vsyncpa [#allocation9], 0
    // Predicated region
    $region2: #{rotary_forward.1} parent=1 // pred_check
      _
    $region3: #{rotary_forward.1} parent=1 // pred_check_branch
      %16 = sbr.rel (0) target = $region5
    $region4: #{rotary_forward.1} parent=1 // pred_region
      %s18 = ssub.s32 1024, 1024
      %19 = vsyncadd [#allocation3], %s18
      %s20 = sshll.u32 [#allocation2], 4
      %s21 = int_to_ptr.vmem [resolvable:$true] %s20
      %26 = dma.hbm_to_vmem [thread:$0]  %s0, 1024, %s21, [#allocation3], 128, 128, 8
    $region5: #{rotary_forward.1} parent=1 // pred_fallthru
      _
    // Predicated region
    $region6: #{rotary_forward.1} parent=1 // pred_check
      _
    $region7: #{rotary_forward.1} parent=1 // pred_check_branch
      %28 = sbr.rel (0) target = $region9
    $region8: #{rotary_forward.1} parent=1 // pred_region
      %s30 = ssub.s32 1024, 1024
      %31 = vsyncadd [#allocation6], %s30
      %s32 = sshll.u32 [#allocation5], 4
      %s33 = int_to_ptr.vmem [resolvable:$true] %s32
      %38 = dma.hbm_to_vmem [thread:$0]  %s1, 1024, %s33, [#allocation6], 128, 128, 8
    $region9: #{rotary_forward.1} parent=1 // pred_fallthru
      _
    // Predicated region
    $region10: #{rotary_forward.1} parent=1 // pred_check
      _
    $region11: #{rotary_forward.1} parent=1 // pred_check_branch
      %40 = sbr.rel (0) target = $region13
    $region12: #{rotary_forward.1} parent=1 // pred_region
      _
    $region13: #{rotary_forward.1} parent=1 // pred_fallthru
      _
    // Predicated region
    $region14: #{rotary_forward.1} parent=1 // pred_check
      _
    $region15: #{rotary_forward.1} parent=1 // pred_check_branch
      %42 = sbr.rel (0) target = $region17
    $region16: #{rotary_forward.1} parent=1 // pred_region
      _
    $region17: #{rotary_forward.1} parent=1 // pred_fallthru
      _
    // Predicated region
    $region18: #{rotary_forward.1} parent=1 // pred_check
      _
    $region19: #{rotary_forward.1} parent=1 // pred_check_branch
      %44 = sbr.rel (0) target = $region21
    $region20: #{rotary_forward.1} parent=1 // pred_region
      %45 = dma.done [#allocation3], 1024
    $region21: #{rotary_forward.1} parent=1 // pred_fallthru
      _
    // Predicated region
    $region22: #{rotary_forward.1} parent=1 // pred_check
      _
    $region23: #{rotary_forward.1} parent=1 // pred_check_branch
      %47 = sbr.rel (0) target = $region25
    $region24: #{rotary_forward.1} parent=1 // pred_region
      %48 = dma.done [#allocation6], 1024
    $region25: #{rotary_forward.1} parent=1 // pred_fallthru
      _
    %v49 = vld [vmem:[%s2] sm:$0xff]
    %v50 = vld [vmem:[%s3] sm:$0xff]
    %v51 = vld [vmem:[#allocation2] sm:$0xff]
    %v52 = vld [vmem:[#allocation2 + $0x8] sm:$0xff]
    %v53 = vld [vmem:[#allocation2 + $0x10] sm:$0xff]
    %v54 = vld [vmem:[#allocation2 + $0x18] sm:$0xff]
    %v55 = vld [vmem:[#allocation2 + $0x20] sm:$0xff]
    %v56 = vld [vmem:[#allocation2 + $0x28] sm:$0xff]
    %v57 = vld [vmem:[#allocation2 + $0x30] sm:$0xff]
    %v58 = vld [vmem:[#allocation2 + $0x38] sm:$0xff]
    %v59 = vmul.f32 %v51, %v49
    %v60 = vmul.f32 %v52, %v49
    %v61 = vmul.f32 %v53, %v49
    %v62 = vmul.f32 %v54, %v49
    %v63 = vmul.f32 %v55, %v49
    %v64 = vmul.f32 %v56, %v49
    %v65 = vmul.f32 %v57, %v49
    %v66 = vmul.f32 %v58, %v49
    %68 = vrot.lane.b32.xlu0 %v50, 16
    %v69 = vpop.permute.xlu0 %68
    %v71 = vmul.f32 %v51, %v69
    %v72 = vmul.f32 %v52, %v69
    %v73 = vmul.f32 %v53, %v69
    %v74 = vmul.f32 %v54, %v69
    %v75 = vmul.f32 %v55, %v69
    %v76 = vmul.f32 %v56, %v69
    %v77 = vmul.f32 %v57, %v69
    %v78 = vmul.f32 %v58, %v69
    %87 = vrot.lane.b32.xlu0 %v71, 112
    %v88 = vpop.permute.xlu0 %87
    %89 = vrot.lane.b32.xlu0 %v72, 112
    %v90 = vpop.permute.xlu0 %89
    %91 = vrot.lane.b32.xlu0 %v73, 112
    %v92 = vpop.permute.xlu0 %91
    %93 = vrot.lane.b32.xlu0 %v74, 112
    %v94 = vpop.permute.xlu0 %93
    %95 = vrot.lane.b32.xlu0 %v75, 112
    %v96 = vpop.permute.xlu0 %95
    %97 = vrot.lane.b32.xlu0 %v76, 112
    %v98 = vpop.permute.xlu0 %97
    %99 = vrot.lane.b32.xlu0 %v77, 112
    %v100 = vpop.permute.xlu0 %99
    %101 = vrot.lane.b32.xlu0 %v78, 112
    %v102 = vpop.permute.xlu0 %101
    %v111 = vsub.f32 %v59, %v88
    %v112 = vsub.f32 %v60, %v90
    %v113 = vsub.f32 %v61, %v92
    %v114 = vsub.f32 %v62, %v94
    %v115 = vsub.f32 %v63, %v96
    %v116 = vsub.f32 %v64, %v98
    %v117 = vsub.f32 %v65, %v100
    %v118 = vsub.f32 %v66, %v102
    %vm119 = vcmask 130048
    %120 = vst.msk [vmem:[#allocation7] sm:$0xff] %vm119, %v111
    %121 = vst.msk [vmem:[#allocation7 + $0x8] sm:$0xff] %vm119, %v112
    %122 = vst.msk [vmem:[#allocation7 + $0x10] sm:$0xff] %vm119, %v113
    %123 = vst.msk [vmem:[#allocation7 + $0x18] sm:$0xff] %vm119, %v114
    %124 = vst.msk [vmem:[#allocation7 + $0x20] sm:$0xff] %vm119, %v115
    %125 = vst.msk [vmem:[#allocation7 + $0x28] sm:$0xff] %vm119, %v116
    %126 = vst.msk [vmem:[#allocation7 + $0x30] sm:$0xff] %vm119, %v117
    %127 = vst.msk [vmem:[#allocation7 + $0x38] sm:$0xff] %vm119, %v118
    %129 = vrot.lane.b32.xlu0 %v49, 16
    %v130 = vpop.permute.xlu0 %129
    %v132 = vmul.f32 %v51, %v130
    %v133 = vmul.f32 %v52, %v130
    %v134 = vmul.f32 %v53, %v130
    %v135 = vmul.f32 %v54, %v130
    %v136 = vmul.f32 %v55, %v130
    %v137 = vmul.f32 %v56, %v130
    %v138 = vmul.f32 %v57, %v130
    %v139 = vmul.f32 %v58, %v130
    %v140 = vmul.f32 %v51, %v50
    %v141 = vmul.f32 %v52, %v50
    %v142 = vmul.f32 %v53, %v50
    %v143 = vmul.f32 %v54, %v50
    %v144 = vmul.f32 %v55, %v50
    %v145 = vmul.f32 %v56, %v50
    %v146 = vmul.f32 %v57, %v50
    %v147 = vmul.f32 %v58, %v50
    %156 = vrot.lane.b32.xlu0 %v140, 16
    %v157 = vpop.permute.xlu0 %156
    %158 = vrot.lane.b32.xlu0 %v141, 16
    %v159 = vpop.permute.xlu0 %158
    %160 = vrot.lane.b32.xlu0 %v142, 16
    %v161 = vpop.permute.xlu0 %160
    %162 = vrot.lane.b32.xlu0 %v143, 16
    %v163 = vpop.permute.xlu0 %162
    %164 = vrot.lane.b32.xlu0 %v144, 16
    %v165 = vpop.permute.xlu0 %164
    %166 = vrot.lane.b32.xlu0 %v145, 16
    %v167 = vpop.permute.xlu0 %166
    %168 = vrot.lane.b32.xlu0 %v146, 16
    %v169 = vpop.permute.xlu0 %168
    %170 = vrot.lane.b32.xlu0 %v147, 16
    %v171 = vpop.permute.xlu0 %170
    %v180 = vadd.f32 %v132, %v157
    %v181 = vadd.f32 %v133, %v159
    %v182 = vadd.f32 %v134, %v161
    %v183 = vadd.f32 %v135, %v163
    %v184 = vadd.f32 %v136, %v165
    %v185 = vadd.f32 %v137, %v167
    %v186 = vadd.f32 %v138, %v169
    %v187 = vadd.f32 %v139, %v171
    %vm188 = vcmask 261248
    %189 = vst.msk [vmem:[#allocation7] sm:$0xff] %vm188, %v180
    %190 = vst.msk [vmem:[#allocation7 + $0x8] sm:$0xff] %vm188, %v181
    %191 = vst.msk [vmem:[#allocation7 + $0x10] sm:$0xff] %vm188, %v182
    %192 = vst.msk [vmem:[#allocation7 + $0x18] sm:$0xff] %vm188, %v183
    %193 = vst.msk [vmem:[#allocation7 + $0x20] sm:$0xff] %vm188, %v184
    %194 = vst.msk [vmem:[#allocation7 + $0x28] sm:$0xff] %vm188, %v185
    %195 = vst.msk [vmem:[#allocation7 + $0x30] sm:$0xff] %vm188, %v186
    %196 = vst.msk [vmem:[#allocation7 + $0x38] sm:$0xff] %vm188, %v187
    %v197 = vld [vmem:[#allocation5] sm:$0xff]
    %v198 = vld [vmem:[#allocation5 + $0x8] sm:$0xff]
    %v199 = vld [vmem:[#allocation5 + $0x10] sm:$0xff]
    %v200 = vld [vmem:[#allocation5 + $0x18] sm:$0xff]
    %v201 = vld [vmem:[#allocation5 + $0x20] sm:$0xff]
    %v202 = vld [vmem:[#allocation5 + $0x28] sm:$0xff]
    %v203 = vld [vmem:[#allocation5 + $0x30] sm:$0xff]
    %v204 = vld [vmem:[#allocation5 + $0x38] sm:$0xff]
    %v205 = vmul.f32 %v197, %v49
    %v206 = vmul.f32 %v198, %v49
    %v207 = vmul.f32 %v199, %v49
    %v208 = vmul.f32 %v200, %v49
    %v209 = vmul.f32 %v201, %v49
    %v210 = vmul.f32 %v202, %v49
    %v211 = vmul.f32 %v203, %v49
    %v212 = vmul.f32 %v204, %v49
    %v213 = vmul.f32 %v197, %v69
    %v214 = vmul.f32 %v198, %v69
    %v215 = vmul.f32 %v199, %v69
    %v216 = vmul.f32 %v200, %v69
    %v217 = vmul.f32 %v201, %v69
    %v218 = vmul.f32 %v202, %v69
    %v219 = vmul.f32 %v203, %v69
    %v220 = vmul.f32 %v204, %v69
    %229 = vrot.lane.b32.xlu0 %v213, 112
    %v230 = vpop.permute.xlu0 %229
    %231 = vrot.lane.b32.xlu0 %v214, 112
    %v232 = vpop.permute.xlu0 %231
    %233 = vrot.lane.b32.xlu0 %v215, 112
    %v234 = vpop.permute.xlu0 %233
    %235 = vrot.lane.b32.xlu0 %v216, 112
    %v236 = vpop.permute.xlu0 %235
    %237 = vrot.lane.b32.xlu0 %v217, 112
    %v238 = vpop.permute.xlu0 %237
    %239 = vrot.lane.b32.xlu0 %v218, 112
    %v240 = vpop.permute.xlu0 %239
    %241 = vrot.lane.b32.xlu0 %v219, 112
    %v242 = vpop.permute.xlu0 %241
    %243 = vrot.lane.b32.xlu0 %v220, 112
    %v244 = vpop.permute.xlu0 %243
    %v253 = vsub.f32 %v205, %v230
    %v254 = vsub.f32 %v206, %v232
    %v255 = vsub.f32 %v207, %v234
    %v256 = vsub.f32 %v208, %v236
    %v257 = vsub.f32 %v209, %v238
    %v258 = vsub.f32 %v210, %v240
    %v259 = vsub.f32 %v211, %v242
    %v260 = vsub.f32 %v212, %v244
    %261 = vst.msk [vmem:[#allocation8] sm:$0xff] %vm119, %v253
    %262 = vst.msk [vmem:[#allocation8 + $0x8] sm:$0xff] %vm119, %v254
    %263 = vst.msk [vmem:[#allocation8 + $0x10] sm:$0xff] %vm119, %v255
    %264 = vst.msk [vmem:[#allocation8 + $0x18] sm:$0xff] %vm119, %v256
    %265 = vst.msk [vmem:[#allocation8 + $0x20] sm:$0xff] %vm119, %v257
    %266 = vst.msk [vmem:[#allocation8 + $0x28] sm:$0xff] %vm119, %v258
    %267 = vst.msk [vmem:[#allocation8 + $0x30] sm:$0xff] %vm119, %v259
    %268 = vst.msk [vmem:[#allocation8 + $0x38] sm:$0xff] %vm119, %v260
    %v269 = vmul.f32 %v197, %v130
    %v270 = vmul.f32 %v198, %v130
    %v271 = vmul.f32 %v199, %v130
    %v272 = vmul.f32 %v200, %v130
    %v273 = vmul.f32 %v201, %v130
    %v274 = vmul.f32 %v202, %v130
    %v275 = vmul.f32 %v203, %v130
    %v276 = vmul.f32 %v204, %v130
    %v277 = vmul.f32 %v197, %v50
    %v278 = vmul.f32 %v198, %v50
    %v279 = vmul.f32 %v199, %v50
    %v280 = vmul.f32 %v200, %v50
    %v281 = vmul.f32 %v201, %v50
    %v282 = vmul.f32 %v202, %v50
    %v283 = vmul.f32 %v203, %v50
    %v284 = vmul.f32 %v204, %v50
    %293 = vrot.lane.b32.xlu0 %v277, 16
    %v294 = vpop.permute.xlu0 %293
    %295 = vrot.lane.b32.xlu0 %v278, 16
    %v296 = vpop.permute.xlu0 %295
    %297 = vrot.lane.b32.xlu0 %v279, 16
    %v298 = vpop.permute.xlu0 %297
    %299 = vrot.lane.b32.xlu0 %v280, 16
    %v300 = vpop.permute.xlu0 %299
    %301 = vrot.lane.b32.xlu0 %v281, 16
    %v302 = vpop.permute.xlu0 %301
    %303 = vrot.lane.b32.xlu0 %v282, 16
    %v304 = vpop.permute.xlu0 %303
    %305 = vrot.lane.b32.xlu0 %v283, 16
    %v306 = vpop.permute.xlu0 %305
    %307 = vrot.lane.b32.xlu0 %v284, 16
    %v308 = vpop.permute.xlu0 %307
    %v317 = vadd.f32 %v269, %v294
    %v318 = vadd.f32 %v270, %v296
    %v319 = vadd.f32 %v271, %v298
    %v320 = vadd.f32 %v272, %v300
    %v321 = vadd.f32 %v273, %v302
    %v322 = vadd.f32 %v274, %v304
    %v323 = vadd.f32 %v275, %v306
    %v324 = vadd.f32 %v276, %v308
    %325 = vst.msk [vmem:[#allocation8] sm:$0xff] %vm188, %v317
    %326 = vst.msk [vmem:[#allocation8 + $0x8] sm:$0xff] %vm188, %v318
    %327 = vst.msk [vmem:[#allocation8 + $0x10] sm:$0xff] %vm188, %v319
    %328 = vst.msk [vmem:[#allocation8 + $0x18] sm:$0xff] %vm188, %v320
    %329 = vst.msk [vmem:[#allocation8 + $0x20] sm:$0xff] %vm188, %v321
    %330 = vst.msk [vmem:[#allocation8 + $0x28] sm:$0xff] %vm188, %v322
    %331 = vst.msk [vmem:[#allocation8 + $0x30] sm:$0xff] %vm188, %v323
    %332 = vst.msk [vmem:[#allocation8 + $0x38] sm:$0xff] %vm188, %v324
    // Predicated region
    $region26: #{rotary_forward.1} parent=1 // pred_check
      _
    $region27: #{rotary_forward.1} parent=1 // pred_check_branch
      %334 = sbr.rel (0) target = $region29
    $region28: #{rotary_forward.1} parent=1 // pred_region
      %s336 = ssub.s32 1024, 1024
      %337 = vsyncadd [#allocation4], %s336
      %s338 = sshll.u32 [#allocation7], 4
      %s339 = int_to_ptr.vmem [resolvable:$true] %s338
      %344 = dma.vmem_to_hbm [thread:$0]  %s339, 1024, %s4, [#allocation4], 128, 128, 8
    $region29: #{rotary_forward.1} parent=1 // pred_fallthru
      _
    // Predicated region
    $region30: #{rotary_forward.1} parent=1 // pred_check
      _
    $region31: #{rotary_forward.1} parent=1 // pred_check_branch
      %346 = sbr.rel (0) target = $region33
    $region32: #{rotary_forward.1} parent=1 // pred_region
      %s348 = ssub.s32 1024, 1024
      %349 = vsyncadd [#allocation9], %s348
      %s350 = sshll.u32 [#allocation8], 4
      %s351 = int_to_ptr.vmem [resolvable:$true] %s350
      %356 = dma.vmem_to_hbm [thread:$0]  %s351, 1024, %s5, [#allocation9], 128, 128, 8
    $region33: #{rotary_forward.1} parent=1 // pred_fallthru
      _
    // Predicated region
    $region34: #{rotary_forward.1} parent=1 // pred_check
      _
    $region35: #{rotary_forward.1} parent=1 // pred_check_branch
      %358 = sbr.rel (0) target = $region37
    $region36: #{rotary_forward.1} parent=1 // pred_region
      %359 = dma.done [#allocation4], 1024
    $region37: #{rotary_forward.1} parent=1 // pred_fallthru
      _
    // Predicated region
    $region38: #{rotary_forward.1} parent=1 // pred_check
      _
    $region39: #{rotary_forward.1} parent=1 // pred_check_branch
      %361 = sbr.rel (0) target = $region41
    $region40: #{rotary_forward.1} parent=1 // pred_region
      %362 = dma.done [#allocation9], 1024
    $region41: #{rotary_forward.1} parent=1 // pred_fallthru
      _
    %363 = vsyncpa [#allocation3], 1
    %364 = vsyncpa [#allocation6], 1
    %365 = vsyncpa [#allocation4], 1
    %366 = vsyncpa [#allocation9], 1

</llo_original>
